<compile_context>
chip_gen: v6e
topology: v6e:2x2x1
jax: 0.10.0
libtpu: 0.0.40
codegen_flags: <defaults>
</compile_context>

<pallas_src>
import functools

import jax
import jax.numpy as jnp
import numpy as np
from jax import lax
from jax.experimental import pallas as pl
from jax.experimental.pallas import tpu as pltpu


# ---------------------------------------------------------------------------
# Fused Pallas kernel: one grid step == `batch_block` batch elements.
# ---------------------------------------------------------------------------
def _fused_attn_kernel(x_ref, wqkv_ref, wout_ref, bout_ref, bias_ref, o_ref,
                       *, heads, n, batch_block):
    bt = batch_block
    c = x_ref.shape[-1]
    oup = wout_ref.shape[-1]

    # Flatten the batch block so the projections run on one tall slab
    # (better sublane/MXU fill than per-batch tiny matmuls).
    xf = x_ref[...].reshape(bt * n, c).astype(jnp.bfloat16)

    contract_last = (((1,), (1,)), ((), ()))        # q . k on last axis, no k.T
    acc = [jnp.zeros((n, oup), jnp.float32) for _ in range(bt)]

    for h in range(heads):                           # static unroll (heads small)
        # Per-head projections from pre-split bf16 weights: every per-head
        # tensor starts at lane 0 (no lane-tile relayout copies); the softmax
        # scale is already folded into the q weights at parameter-prep time.
        qh = jnp.dot(xf, wqkv_ref[0, h],
                     preferred_element_type=jnp.float32).astype(jnp.bfloat16)
        kh = jnp.dot(xf, wqkv_ref[1, h],
                     preferred_element_type=jnp.float32).astype(jnp.bfloat16)
        vh = jnp.dot(xf, wqkv_ref[2, h],
                     preferred_element_type=jnp.float32).astype(jnp.bfloat16)
        bias_h = bias_ref[h].astype(jnp.float32)                 # (n, n) f32
        w_out_h = wout_ref[h]                                    # (d, oup) bf16

        for b in range(bt):                          # attention is per batch elem
            rows = slice(b * n, (b + 1) * n)         # sublane-aligned static slice
            s = lax.dot_general(qh[rows], kh[rows], contract_last,
                                preferred_element_type=jnp.float32)  # (n, n)
            s = s + bias_h
            # Softmax statistics stay f32 (v5e VPU/EUP have no bf16).
            m = jnp.max(s, axis=-1, keepdims=True)
            p = jnp.exp(s - m)
            inv = pl.reciprocal(jnp.sum(p, axis=-1, keepdims=True), approx=True)
            attn = (p * inv).astype(jnp.bfloat16)
            oh = jnp.dot(attn, vh[rows],
                         preferred_element_type=jnp.float32)     # (n, d)
            # Output projection fused per head: one f32 accumulator per batch
            # element stays live, no head concat / full-width final dot.
            acc[b] = acc[b] + jnp.dot(oh.astype(jnp.bfloat16), w_out_h,
                                      preferred_element_type=jnp.float32)

    y = acc[0] if bt == 1 else jnp.concatenate(acc, axis=0)  # sublane concat only
    y = y + bout_ref[...]                            # (bt*n, oup) + (1, oup)
    # TODO(synk): nn.Dropout in the PyTorch to_out Sequential is identity in
    # eval mode; train-mode dropout is not implemented here.
    o_ref[...] = y.reshape(bt, n, oup).astype(o_ref.dtype)


def attention_forward(x, params, *, heads, batch_block=None):
    """Fused forward. `params` must come from prepare_params()."""
    B, N, C = x.shape
    wqkv = params["w_qkv_split"]   # (3, heads, C, dim_head) bf16, scale folded
    wout = params["w_out_split"]   # (heads, dim_head, oup)  bf16
    bout = params["b_out_2d"]      # (1, oup)                f32
    bias = params["attn_bias"]     # (heads, N, N)           bf16
    dim_head = wqkv.shape[-1]
    oup = wout.shape[-1]

    if batch_block is None:
        # v7x has 2 TensorCores: keep exactly 2 "parallel" grid steps.
        # On v5e/v6e (1 TC) pass batch_block=B to collapse the grid entirely.
        batch_block = B // 2 if (B % 2 == 0 and B > 1) else B
    assert B % batch_block == 0, "batch_block must divide the batch"
    grid_b = B // batch_block
    # TODO(synk): if B == 1 on v7x, split heads or N onto the parallel axis.

    kernel = functools.partial(_fused_attn_kernel, heads=heads, n=N,
                               batch_block=batch_block)

    # TODO(synk): for large N (>~512) switch to a flash-style KV-tiled variant
    # (online softmax, bias tiled over (head, kv-block),
    # pipeline_mode=pl.Buffered(1) on the resident weight/bias inputs, and an
    # explicit vmem_limit_bytes) -- the resident (heads, N, N) bias would
    # otherwise exceed v7x's 64 MiB VMEM / v6e's 32 MiB default scoped limit.
    return pl.pallas_call(
        kernel,
        out_shape=jax.ShapeDtypeStruct((B, N, oup), x.dtype),
        grid=(grid_b,),
        in_specs=[
            pl.BlockSpec((batch_block, N, C), lambda g: (g, 0, 0)),       # x
            pl.BlockSpec((3, heads, C, dim_head), lambda g: (0, 0, 0, 0)),  # w_qkv
            pl.BlockSpec((heads, dim_head, oup), lambda g: (0, 0, 0)),    # w_out
            pl.BlockSpec((1, oup), lambda g: (0, 0)),                     # b_out
            pl.BlockSpec((heads, N, N), lambda g: (0, 0, 0)),             # bias
        ],
        out_specs=pl.BlockSpec((batch_block, N, oup), lambda g: (g, 0, 0)),
        compiler_params=pltpu.CompilerParams(
            dimension_semantics=("parallel",)),
    )(x, wqkv, wout, bout, bias)


# ---------------------------------------------------------------------------
# Input-independent, parameter-load-time setup (NOT per forward call).
# ---------------------------------------------------------------------------
def make_relative_index(ih, iw):
    """Reproduces the PyTorch buffer `relative_index` exactly (shape (n*n,))."""
    yy, xx = np.meshgrid(np.arange(ih), np.arange(iw), indexing="ij")
    coords = np.stack([yy, xx]).reshape(2, -1)                  # (2, n)
    rel = coords[:, :, None] - coords[:, None, :]               # (2, n, n)
    rel[0] += ih - 1
    rel[1] += iw - 1
    rel[0] *= 2 * iw - 1
    rel = np.transpose(rel, (1, 2, 0))                          # (n, n, 2)
    return rel.sum(-1).reshape(-1)                              # (n*n,)


def prepare_params(raw, *, heads, dim_head, ih, iw):
    """One-time repack:
      * w_qkv (C, 3*inner) -> (3, heads, C, dim_head) bf16, softmax scale
        folded into the q weights (column order of the Linear out-dim is
        (qkv, head, d)).
      * w_out (inner, oup) -> (heads, dim_head, oup) bf16.
      * b_out -> (1, oup) f32.
      * relative-position bias gathered/reshaped to (heads, N, N) bf16.
    """
    C = raw["w_qkv"].shape[0]
    oup = raw["w_out"].shape[1]
    n = ih * iw
    scale = dim_head ** -0.5
    w3 = raw["w_qkv"].reshape(C, 3, heads, dim_head).transpose(1, 2, 0, 3)
    w3 = w3.at[0].multiply(scale)                 # fold softmax scale into q
    rel_idx = np.asarray(make_relative_index(ih, iw))
    bias = raw["relative_bias_table"][rel_idx].T.reshape(heads, n, n)
    return {
        "w_qkv_split": w3.astype(jnp.bfloat16),
        "w_out_split": raw["w_out"].reshape(heads, dim_head, oup)
                                   .astype(jnp.bfloat16),
        "b_out_2d": raw["b_out"].reshape(1, oup).astype(jnp.float32),
        "attn_bias": bias.astype(jnp.bfloat16),
    }


# ---------------------------------------------------------------------------
# Pure-JAX f32 reference (mirrors the PyTorch forward, incl. raw table gather).
# ---------------------------------------------------------------------------
def reference_forward(x, raw, *, heads, dim_head):
    B, N, C = x.shape
    inner = heads * dim_head
    scale = dim_head ** -0.5
    qkv = x @ raw["w_qkv"]
    q, k, v = jnp.split(qkv, 3, axis=-1)
    to_h = lambda t: t.reshape(B, N, heads, dim_head).transpose(0, 2, 1, 3)
    q, k, v = map(to_h, (q, k, v))
    dots = jnp.einsum("bhnd,bhmd->bhnm", q, k) * scale
    bias = raw["relative_bias_table"][raw["relative_index"]].T.reshape(
        1, heads, N, N)
    attn = jax.nn.softmax(dots + bias, axis=-1)
    out = jnp.einsum("bhnm,bhmd->bhnd", attn, v)
    out = out.transpose(0, 2, 1, 3).reshape(B, N, inner)
    return out @ raw["w_out"] + raw["b_out"]


if __name__ == "__main__":
    # Small, forward-consistent shapes.
    B = 2
    ih = iw = 4
    N = ih * iw                # seq length = 16
    inp = 32                   # input channels
    oup = 32
    heads = 2
    dim_head = 8
    inner = heads * dim_head

    key = jax.random.PRNGKey(0)
    k1, k2, k3, k4, k5 = jax.random.split(key, 5)

    x = jax.random.normal(k1, (B, N, inp), dtype=jnp.float32)

    raw = {
        # nn.Linear stores weight as (out, in); we keep (in, out) for x @ W.
        "w_qkv": jax.random.normal(k2, (inp, 3 * inner), jnp.float32) * 0.05,
        "w_out": jax.random.normal(k3, (inner, oup), jnp.float32) * 0.05,
        "b_out": jax.random.normal(k4, (oup,), jnp.float32) * 0.05,
        # PyTorch inits the table to zeros; small random values so the bias
        # path is actually exercised (deterministic in-script init).
        "relative_bias_table": jax.random.normal(
            k5, ((2 * ih - 1) * (2 * iw - 1), heads), jnp.float32) * 0.05,
        "relative_index": jnp.asarray(make_relative_index(ih, iw), jnp.int32),
    }
    # One-time parameter repack (scale folding, head split, bias gather).
    params = prepare_params(raw, heads=heads, dim_head=dim_head, ih=ih, iw=iw)

    out = attention_forward(x, params, heads=heads)
    out = jax.block_until_ready(out)

    ref = reference_forward(x, raw, heads=heads, dim_head=dim_head)
    # bf16 MXU operands + approx-reciprocal softmax vs. the pure-f32 reference.
    np.testing.assert_allclose(np.asarray(out), np.asarray(ref),
                               rtol=1e-2, atol=1e-2)

    print("KERNEL_OK")
</pallas_src>

<mosaic_0001>
module attributes {stable_mosaic.version = 11 : i64} {
  func.func @_fused_attn_kernel(%arg0: i32, %arg1: memref<1x16x32xf32, #tpu.memory_space<vmem>>, %arg2: memref<3x2x32x8xbf16, #tpu.memory_space<vmem>>, %arg3: memref<2x8x32xbf16, #tpu.memory_space<vmem>>, %arg4: memref<1x32xf32, #tpu.memory_space<vmem>>, %arg5: memref<2x16x16xbf16, #tpu.memory_space<vmem>>, %arg6: memref<1x16x32xf32, #tpu.memory_space<vmem>>) attributes {dimension_semantics = [#tpu.dimension_semantics<parallel>], iteration_bounds = array<i64: 2>, scalar_prefetch = 0 : i64, scratch_operands = 0 : i64, tpu.core_type = #tpu.core_type<tc>, window_params = [{transform_indices = @transform_0, window_bounds = array<i64: 1, 16, 32>}, {pipeline_mode = #tpu.pipeline_mode<synchronous>, transform_indices = @transform_1, window_bounds = array<i64: 3, 2, 32, 8>}, {pipeline_mode = #tpu.pipeline_mode<synchronous>, transform_indices = @transform_2, window_bounds = array<i64: 2, 8, 32>}, {pipeline_mode = #tpu.pipeline_mode<synchronous>, transform_indices = @transform_3, window_bounds = array<i64: 1, 32>}, {pipeline_mode = #tpu.pipeline_mode<synchronous>, transform_indices = @transform_4, window_bounds = array<i64: 2, 16, 16>}, {transform_indices = @transform_5, window_bounds = array<i64: 1, 16, 32>}]} {
    %c0 = arith.constant 0 : index
    %c0_0 = arith.constant 0 : index
    %c0_1 = arith.constant 0 : index
    %0 = vector.load %arg1[%c0, %c0_0, %c0_1] : memref<1x16x32xf32, #tpu.memory_space<vmem>>, vector<1x16x32xf32>
    %1 = vector.shape_cast %0 : vector<1x16x32xf32> to vector<16x32xf32>
    %2 = arith.truncf %1 : vector<16x32xf32> to vector<16x32xbf16>
    %cst = arith.constant 0.000000e+00 : f32
    %3 = vector.broadcast %cst : f32 to vector<16x32xf32>
    %c0_2 = arith.constant 0 : index
    %c0_3 = arith.constant 0 : index
    %c0_4 = arith.constant 0 : index
    %c0_5 = arith.constant 0 : index
    %4 = vector.load %arg2[%c0_2, %c0_3, %c0_4, %c0_5] : memref<3x2x32x8xbf16, #tpu.memory_space<vmem>>, vector<1x1x32x8xbf16>
    %5 = vector.shape_cast %4 : vector<1x1x32x8xbf16> to vector<32x8xbf16>
    %cst_6 = arith.constant dense<0.000000e+00> : vector<16x8xf32>
    %6 = tpu.matmul %2, %5, %cst_6 {dimension_numbers = #tpu.dot_dimension_numbers<[1], [0], [0], [1], [0, 0, 1, 1], [], []>} : vector<16x32xbf16>, vector<32x8xbf16>, vector<16x8xf32> -> vector<16x8xf32>
    %7 = arith.truncf %6 : vector<16x8xf32> to vector<16x8xbf16>
    %c1 = arith.constant 1 : index
    %c0_7 = arith.constant 0 : index
    %c0_8 = arith.constant 0 : index
    %c0_9 = arith.constant 0 : index
    %8 = vector.load %arg2[%c1, %c0_7, %c0_8, %c0_9] : memref<3x2x32x8xbf16, #tpu.memory_space<vmem>>, vector<1x1x32x8xbf16>
    %9 = vector.shape_cast %8 : vector<1x1x32x8xbf16> to vector<32x8xbf16>
    %cst_10 = arith.constant dense<0.000000e+00> : vector<16x8xf32>
    %10 = tpu.matmul %2, %9, %cst_10 {dimension_numbers = #tpu.dot_dimension_numbers<[1], [0], [0], [1], [0, 0, 1, 1], [], []>} : vector<16x32xbf16>, vector<32x8xbf16>, vector<16x8xf32> -> vector<16x8xf32>
    %11 = arith.truncf %10 : vector<16x8xf32> to vector<16x8xbf16>
    %c2 = arith.constant 2 : index
    %c0_11 = arith.constant 0 : index
    %c0_12 = arith.constant 0 : index
    %c0_13 = arith.constant 0 : index
    %12 = vector.load %arg2[%c2, %c0_11, %c0_12, %c0_13] : memref<3x2x32x8xbf16, #tpu.memory_space<vmem>>, vector<1x1x32x8xbf16>
    %13 = vector.shape_cast %12 : vector<1x1x32x8xbf16> to vector<32x8xbf16>
    %cst_14 = arith.constant dense<0.000000e+00> : vector<16x8xf32>
    %14 = tpu.matmul %2, %13, %cst_14 {dimension_numbers = #tpu.dot_dimension_numbers<[1], [0], [0], [1], [0, 0, 1, 1], [], []>} : vector<16x32xbf16>, vector<32x8xbf16>, vector<16x8xf32> -> vector<16x8xf32>
    %15 = arith.truncf %14 : vector<16x8xf32> to vector<16x8xbf16>
    %c0_15 = arith.constant 0 : index
    %c0_16 = arith.constant 0 : index
    %c0_17 = arith.constant 0 : index
    %16 = vector.load %arg5[%c0_15, %c0_16, %c0_17] : memref<2x16x16xbf16, #tpu.memory_space<vmem>>, vector<1x16x16xbf16>
    %17 = vector.shape_cast %16 : vector<1x16x16xbf16> to vector<16x16xbf16>
    %18 = arith.extf %17 : vector<16x16xbf16> to vector<16x16xf32>
    %c0_18 = arith.constant 0 : index
    %c0_19 = arith.constant 0 : index
    %c0_20 = arith.constant 0 : index
    %19 = vector.load %arg3[%c0_18, %c0_19, %c0_20] : memref<2x8x32xbf16, #tpu.memory_space<vmem>>, vector<1x8x32xbf16>
    %20 = vector.shape_cast %19 : vector<1x8x32xbf16> to vector<8x32xbf16>
    %cst_21 = arith.constant dense<0.000000e+00> : vector<16x16xf32>
    %21 = tpu.matmul %7, %11, %cst_21 {dimension_numbers = #tpu.dot_dimension_numbers<[1], [1], [0], [0], [0, 0, 1, 0], [], []>} : vector<16x8xbf16>, vector<16x8xbf16>, vector<16x16xf32> -> vector<16x16xf32>
    %22 = arith.addf %21, %18 : vector<16x16xf32>
    %cst_22 = arith.constant dense<0xFF800000> : vector<16xf32>
    %23 = vector.multi_reduction <maximumf>, %22, %cst_22 [1] : vector<16x16xf32> to vector<16xf32>
    %24 = vector.shape_cast %23 : vector<16xf32> to vector<16x1xf32>
    %25 = vector.broadcast %24 : vector<16x1xf32> to vector<16x16xf32>
    %26 = arith.subf %22, %25 : vector<16x16xf32>
    %27 = math.exp %26 : vector<16x16xf32>
    %cst_23 = arith.constant dense<0.000000e+00> : vector<16xf32>
    %28 = vector.multi_reduction <add>, %27, %cst_23 [1] : vector<16x16xf32> to vector<16xf32>
    %29 = vector.shape_cast %28 : vector<16xf32> to vector<16x1xf32>
    %30 = tpu.reciprocal %29 {approx = true} : vector<16x1xf32> -> vector<16x1xf32>
    %31 = vector.broadcast %30 : vector<16x1xf32> to vector<16x16xf32>
    %32 = arith.mulf %27, %31 : vector<16x16xf32>
    %33 = arith.truncf %32 : vector<16x16xf32> to vector<16x16xbf16>
    %cst_24 = arith.constant dense<0.000000e+00> : vector<16x8xf32>
    %34 = tpu.matmul %33, %15, %cst_24 {dimension_numbers = #tpu.dot_dimension_numbers<[1], [0], [0], [1], [0, 0, 1, 1], [], []>} : vector<16x16xbf16>, vector<16x8xbf16>, vector<16x8xf32> -> vector<16x8xf32>
    %35 = arith.truncf %34 : vector<16x8xf32> to vector<16x8xbf16>
    %cst_25 = arith.constant dense<0.000000e+00> : vector<16x32xf32>
    %36 = tpu.matmul %35, %20, %cst_25 {dimension_numbers = #tpu.dot_dimension_numbers<[1], [0], [0], [1], [0, 0, 1, 1], [], []>} : vector<16x8xbf16>, vector<8x32xbf16>, vector<16x32xf32> -> vector<16x32xf32>
    %37 = arith.addf %3, %36 : vector<16x32xf32>
    %c0_26 = arith.constant 0 : index
    %c1_27 = arith.constant 1 : index
    %c0_28 = arith.constant 0 : index
    %c0_29 = arith.constant 0 : index
    %38 = vector.load %arg2[%c0_26, %c1_27, %c0_28, %c0_29] : memref<3x2x32x8xbf16, #tpu.memory_space<vmem>>, vector<1x1x32x8xbf16>
    %39 = vector.shape_cast %38 : vector<1x1x32x8xbf16> to vector<32x8xbf16>
    %cst_30 = arith.constant dense<0.000000e+00> : vector<16x8xf32>
    %40 = tpu.matmul %2, %39, %cst_30 {dimension_numbers = #tpu.dot_dimension_numbers<[1], [0], [0], [1], [0, 0, 1, 1], [], []>} : vector<16x32xbf16>, vector<32x8xbf16>, vector<16x8xf32> -> vector<16x8xf32>
    %41 = arith.truncf %40 : vector<16x8xf32> to vector<16x8xbf16>
    %c1_31 = arith.constant 1 : index
    %c1_32 = arith.constant 1 : index
    %c0_33 = arith.constant 0 : index
    %c0_34 = arith.constant 0 : index
    %42 = vector.load %arg2[%c1_31, %c1_32, %c0_33, %c0_34] : memref<3x2x32x8xbf16, #tpu.memory_space<vmem>>, vector<1x1x32x8xbf16>
    %43 = vector.shape_cast %42 : vector<1x1x32x8xbf16> to vector<32x8xbf16>
    %cst_35 = arith.constant dense<0.000000e+00> : vector<16x8xf32>
    %44 = tpu.matmul %2, %43, %cst_35 {dimension_numbers = #tpu.dot_dimension_numbers<[1], [0], [0], [1], [0, 0, 1, 1], [], []>} : vector<16x32xbf16>, vector<32x8xbf16>, vector<16x8xf32> -> vector<16x8xf32>
    %45 = arith.truncf %44 : vector<16x8xf32> to vector<16x8xbf16>
    %c2_36 = arith.constant 2 : index
    %c1_37 = arith.constant 1 : index
    %c0_38 = arith.constant 0 : index
    %c0_39 = arith.constant 0 : index
    %46 = vector.load %arg2[%c2_36, %c1_37, %c0_38, %c0_39] : memref<3x2x32x8xbf16, #tpu.memory_space<vmem>>, vector<1x1x32x8xbf16>
    %47 = vector.shape_cast %46 : vector<1x1x32x8xbf16> to vector<32x8xbf16>
    %cst_40 = arith.constant dense<0.000000e+00> : vector<16x8xf32>
    %48 = tpu.matmul %2, %47, %cst_40 {dimension_numbers = #tpu.dot_dimension_numbers<[1], [0], [0], [1], [0, 0, 1, 1], [], []>} : vector<16x32xbf16>, vector<32x8xbf16>, vector<16x8xf32> -> vector<16x8xf32>
    %49 = arith.truncf %48 : vector<16x8xf32> to vector<16x8xbf16>
    %c1_41 = arith.constant 1 : index
    %c0_42 = arith.constant 0 : index
    %c0_43 = arith.constant 0 : index
    %50 = vector.load %arg5[%c1_41, %c0_42, %c0_43] : memref<2x16x16xbf16, #tpu.memory_space<vmem>>, vector<1x16x16xbf16>
    %51 = vector.shape_cast %50 : vector<1x16x16xbf16> to vector<16x16xbf16>
    %52 = arith.extf %51 : vector<16x16xbf16> to vector<16x16xf32>
    %c1_44 = arith.constant 1 : index
    %c0_45 = arith.constant 0 : index
    %c0_46 = arith.constant 0 : index
    %53 = vector.load %arg3[%c1_44, %c0_45, %c0_46] : memref<2x8x32xbf16, #tpu.memory_space<vmem>>, vector<1x8x32xbf16>
    %54 = vector.shape_cast %53 : vector<1x8x32xbf16> to vector<8x32xbf16>
    %cst_47 = arith.constant dense<0.000000e+00> : vector<16x16xf32>
    %55 = tpu.matmul %41, %45, %cst_47 {dimension_numbers = #tpu.dot_dimension_numbers<[1], [1], [0], [0], [0, 0, 1, 0], [], []>} : vector<16x8xbf16>, vector<16x8xbf16>, vector<16x16xf32> -> vector<16x16xf32>
    %56 = arith.addf %55, %52 : vector<16x16xf32>
    %cst_48 = arith.constant dense<0xFF800000> : vector<16xf32>
    %57 = vector.multi_reduction <maximumf>, %56, %cst_48 [1] : vector<16x16xf32> to vector<16xf32>
    %58 = vector.shape_cast %57 : vector<16xf32> to vector<16x1xf32>
    %59 = vector.broadcast %58 : vector<16x1xf32> to vector<16x16xf32>
    %60 = arith.subf %56, %59 : vector<16x16xf32>
    %61 = math.exp %60 : vector<16x16xf32>
    %cst_49 = arith.constant dense<0.000000e+00> : vector<16xf32>
    %62 = vector.multi_reduction <add>, %61, %cst_49 [1] : vector<16x16xf32> to vector<16xf32>
    %63 = vector.shape_cast %62 : vector<16xf32> to vector<16x1xf32>
    %64 = tpu.reciprocal %63 {approx = true} : vector<16x1xf32> -> vector<16x1xf32>
    %65 = vector.broadcast %64 : vector<16x1xf32> to vector<16x16xf32>
    %66 = arith.mulf %61, %65 : vector<16x16xf32>
    %67 = arith.truncf %66 : vector<16x16xf32> to vector<16x16xbf16>
    %cst_50 = arith.constant dense<0.000000e+00> : vector<16x8xf32>
    %68 = tpu.matmul %67, %49, %cst_50 {dimension_numbers = #tpu.dot_dimension_numbers<[1], [0], [0], [1], [0, 0, 1, 1], [], []>} : vector<16x16xbf16>, vector<16x8xbf16>, vector<16x8xf32> -> vector<16x8xf32>
    %69 = arith.truncf %68 : vector<16x8xf32> to vector<16x8xbf16>
    %cst_51 = arith.constant dense<0.000000e+00> : vector<16x32xf32>
    %70 = tpu.matmul %69, %54, %cst_51 {dimension_numbers = #tpu.dot_dimension_numbers<[1], [0], [0], [1], [0, 0, 1, 1], [], []>} : vector<16x8xbf16>, vector<8x32xbf16>, vector<16x32xf32> -> vector<16x32xf32>
    %71 = arith.addf %37, %70 : vector<16x32xf32>
    %c0_52 = arith.constant 0 : index
    %c0_53 = arith.constant 0 : index
    %72 = vector.load %arg4[%c0_52, %c0_53] : memref<1x32xf32, #tpu.memory_space<vmem>>, vector<1x32xf32>
    %73 = vector.broadcast %72 : vector<1x32xf32> to vector<16x32xf32>
    %74 = arith.addf %71, %73 : vector<16x32xf32>
    %75 = vector.shape_cast %74 : vector<16x32xf32> to vector<1x16x32xf32>
    %c0_54 = arith.constant 0 : index
    %c0_55 = arith.constant 0 : index
    %c0_56 = arith.constant 0 : index
    %76 = vector.load %arg6[%c0_54, %c0_55, %c0_56] : memref<1x16x32xf32, #tpu.memory_space<vmem>>, vector<1x16x32xf32>
    tpu.vector_store %arg6[%c0_54, %c0_55, %c0_56], %75 {strides = array<i32>} : memref<1x16x32xf32, #tpu.memory_space<vmem>>, vector<1x16x32xf32>,
    return
  }
  func.func @transform_0(%arg0: i32) -> (i32, i32, i32) {
    %c0_i32 = arith.constant 0 : i32
    %c0_i32_0 = arith.constant 0 : i32
    %c0_i32_1 = arith.constant 0 : i32
    return %arg0, %c0_i32, %c0_i32_0 : i32, i32, i32
  }
  func.func @transform_1(%arg0: i32) -> (i32, i32, i32, i32) {
    %c0_i32 = arith.constant 0 : i32
    %c0_i32_0 = arith.constant 0 : i32
    %c0_i32_1 = arith.constant 0 : i32
    %c0_i32_2 = arith.constant 0 : i32
    %c0_i32_3 = arith.constant 0 : i32
    return %c0_i32, %c0_i32_0, %c0_i32_1, %c0_i32_2 : i32, i32, i32, i32
  }
  func.func @transform_2(%arg0: i32) -> (i32, i32, i32) {
    %c0_i32 = arith.constant 0 : i32
    %c0_i32_0 = arith.constant 0 : i32
    %c0_i32_1 = arith.constant 0 : i32
    %c0_i32_2 = arith.constant 0 : i32
    return %c0_i32, %c0_i32_0, %c0_i32_1 : i32, i32, i32
  }
  func.func @transform_3(%arg0: i32) -> (i32, i32) {
    %c0_i32 = arith.constant 0 : i32
    %c0_i32_0 = arith.constant 0 : i32
    %c0_i32_1 = arith.constant 0 : i32
    return %c0_i32, %c0_i32_0 : i32, i32
  }
  func.func @transform_4(%arg0: i32) -> (i32, i32, i32) {
    %c0_i32 = arith.constant 0 : i32
    %c0_i32_0 = arith.constant 0 : i32
    %c0_i32_1 = arith.constant 0 : i32
    %c0_i32_2 = arith.constant 0 : i32
    return %c0_i32, %c0_i32_0, %c0_i32_1 : i32, i32, i32
  }
  func.func @transform_5(%arg0: i32) -> (i32, i32, i32) {
    %c0_i32 = arith.constant 0 : i32
    %c0_i32_0 = arith.constant 0 : i32
    %c0_i32_1 = arith.constant 0 : i32
    return %arg0, %c0_i32, %c0_i32_0 : i32, i32, i32
  }
}

</mosaic_0001>

<llo_original>
// kernel: tpu_custom_call.1
$region0: #{tpu_custom_call.1}
  #allocation0 [shape = 'u32[]', space=smem, size = 0x4, offset = 0x4, fixed_abs, tag = 'smem constant byte address 0x4 - core index']
  #allocation1 [shape = 'u32[144,128]{1,0:T(1,128)}', space=vmem, size = 0x12000, scoped, tag = 'internal scratch']
  %s0 = inlined_call_operand.vmem [shape: f32[2,16,32], index: 0, kind: input, shape index: {}]
  %s1 = inlined_call_operand.vmem [shape: bf16[3,2,32,8], index: 1, kind: input, shape index: {}]
  %s2 = inlined_call_operand.vmem [shape: bf16[2,8,32], index: 2, kind: input, shape index: {}]
  %s3 = inlined_call_operand.vmem [shape: f32[1,32], index: 3, kind: input, shape index: {}]
  %s4 = inlined_call_operand.vmem [shape: bf16[2,16,16], index: 4, kind: input, shape index: {}]
  %s5 = inlined_call_operand.hbm [shape: f32[2,16,32], index: 5, kind: output, shape index: {}]
  %s6 = sld [smem:[#allocation0]]
  $region53: #{tpu_custom_call.1} parent=0
    _
  %s8 = ssub.s32 1, %s6
  %s9 = scalar_select 0, %s8, %s6
  $region1: #{tpu_custom_call.1} parent=0
    #allocation2 [shape = 'u8[16384]{0}', space=vmem, size = 0x4000, scoped, tag = 'output window, operand 0']
    #allocation3 [shape = 's32[2]{0}', space=sflag, size = 0x8, scoped, tag = 'scoped memory for tpu_custom_call.1']
    %10 = vsyncpa [#allocation3], 0
    %s11 = scalar_lea.sflag [#allocation3], 1
    %12 = vsyncpa %s11, 0
    loop: start=0, step=1, limit=4
    $region2: #{tpu_custom_call.1} parent=1 // loop_pre_header
      _
    $region3: #{tpu_custom_call.1} parent=1 // loop_header
      %s14 = sphi 0, %s18
      %p15 = scmp.ge.s32.totalorder %s14, 4
      %s24 = sphi 0, %s26
      %s27 = sphi 0, %s24
      %s28 = sphi 0, %s27
      %s44 = sphi 0, %s28
      %s48 = sphi 0, %s48
      %s50 = sphi 0, %s48
      %s51 = sphi 0, %s50
      %s65 = sphi 0, %s51
      %s69 = sphi 0, %s69
      %s71 = sphi 0, %s69
      %s72 = sphi 0, %s71
      %s86 = sphi 0, %s72
      %s90 = sphi 0, %s90
      %s92 = sphi 0, %s90
      %s93 = sphi 0, %s92
      %s107 = sphi 0, %s93
      %s111 = sphi 0, %s111
      %s113 = sphi 0, %s111
      %s114 = sphi 0, %s113
      %s128 = sphi 0, %s114
      %s134 = sphi 0, %s136
      %s137 = sphi 0, %s134
      %s138 = sphi 0, %s137
      %s154 = sphi 0, %s138
    $region4: #{tpu_custom_call.1} parent=1 // loop_header_branch
      %17 = sbr.rel (%p15) target = $region8
    $region5: #{tpu_custom_call.1} parent=1 // loop_body
      %s19 = ssub.s32 %s14, 1
      %s20 = ssub.s32 %s14, 2
      %s21 = sadd.s32 %s14, 1
      %s22 = ssub.s32 %s14, %s21
      %p23 = scmp.eq.s32.totalorder %s22, 0
      %s25 = sadd.s32 %s24, 1
      %s26 = scalar_select %p23, %s24, %s25
      %p29 = pneg %p23
      %p30 = scmp.eq.s32.totalorder %s14, 1
      %p31 = por %p29, %p30
      %p32 = scmp.ne.s32.totalorder %s24, %s27
      %p33 = scmp.eq.s32.totalorder %s14, 0
      %p34 = por %p32, %p33
      %p35 = scmp.ne.s32.totalorder %s24, %s27
      %p36 = scmp.eq.s32.totalorder %s19, 1
      %p37 = por %p35, %p36
      %p38 = scmp.ne.s32.totalorder %s27, %s28
      %p39 = scmp.eq.s32.totalorder %s19, 0
      %p40 = por %p38, %p39
      %p41 = scmp.ne.s32.totalorder %s27, %s28
      %p42 = scmp.eq.s32.totalorder %s20, 1
      %p43 = por %p41, %p42
      %p45 = scmp.ne.s32.totalorder %s28, %s44
      %p46 = scmp.eq.s32.totalorder %s20, 0
      %p47 = por %p45, %p46
      %s49 = sadd.s32 %s48, 1
      %p52 = scmp.eq.s32.totalorder %s14, 1
      %p53 = scmp.ne.s32.totalorder %s48, %s50
      %p54 = scmp.eq.s32.totalorder %s14, 0
      %p55 = por %p53, %p54
      %p56 = scmp.ne.s32.totalorder %s48, %s50
      %p57 = scmp.eq.s32.totalorder %s19, 1
      %p58 = por %p56, %p57
      %p59 = scmp.ne.s32.totalorder %s50, %s51
      %p60 = scmp.eq.s32.totalorder %s19, 0
      %p61 = por %p59, %p60
      %p62 = scmp.ne.s32.totalorder %s50, %s51
      %p63 = scmp.eq.s32.totalorder %s20, 1
      %p64 = por %p62, %p63
      %p66 = scmp.ne.s32.totalorder %s51, %s65
      %p67 = scmp.eq.s32.totalorder %s20, 0
      %p68 = por %p66, %p67
      %s70 = sadd.s32 %s69, 1
      %p73 = scmp.eq.s32.totalorder %s14, 1
      %p74 = scmp.ne.s32.totalorder %s69, %s71
      %p75 = scmp.eq.s32.totalorder %s14, 0
      %p76 = por %p74, %p75
      %p77 = scmp.ne.s32.totalorder %s69, %s71
      %p78 = scmp.eq.s32.totalorder %s19, 1
      %p79 = por %p77, %p78
      %p80 = scmp.ne.s32.totalorder %s71, %s72
      %p81 = scmp.eq.s32.totalorder %s19, 0
      %p82 = por %p80, %p81
      %p83 = scmp.ne.s32.totalorder %s71, %s72
      %p84 = scmp.eq.s32.totalorder %s20, 1
      %p85 = por %p83, %p84
      %p87 = scmp.ne.s32.totalorder %s72, %s86
      %p88 = scmp.eq.s32.totalorder %s20, 0
      %p89 = por %p87, %p88
      %s91 = sadd.s32 %s90, 1
      %p94 = scmp.eq.s32.totalorder %s14, 1
      %p95 = scmp.ne.s32.totalorder %s90, %s92
      %p96 = scmp.eq.s32.totalorder %s14, 0
      %p97 = por %p95, %p96
      %p98 = scmp.ne.s32.totalorder %s90, %s92
      %p99 = scmp.eq.s32.totalorder %s19, 1
      %p100 = por %p98, %p99
      %p101 = scmp.ne.s32.totalorder %s92, %s93
      %p102 = scmp.eq.s32.totalorder %s19, 0
      %p103 = por %p101, %p102
      %p104 = scmp.ne.s32.totalorder %s92, %s93
      %p105 = scmp.eq.s32.totalorder %s20, 1
      %p106 = por %p104, %p105
      %p108 = scmp.ne.s32.totalorder %s93, %s107
      %p109 = scmp.eq.s32.totalorder %s20, 0
      %p110 = por %p108, %p109
      %s112 = sadd.s32 %s111, 1
      %p115 = scmp.eq.s32.totalorder %s14, 1
      %p116 = scmp.ne.s32.totalorder %s111, %s113
      %p117 = scmp.eq.s32.totalorder %s14, 0
      %p118 = por %p116, %p117
      %p119 = scmp.ne.s32.totalorder %s111, %s113
      %p120 = scmp.eq.s32.totalorder %s19, 1
      %p121 = por %p119, %p120
      %p122 = scmp.ne.s32.totalorder %s113, %s114
      %p123 = scmp.eq.s32.totalorder %s19, 0
      %p124 = por %p122, %p123
      %p125 = scmp.ne.s32.totalorder %s113, %s114
      %p126 = scmp.eq.s32.totalorder %s20, 1
      %p127 = por %p125, %p126
      %p129 = scmp.ne.s32.totalorder %s114, %s128
      %p130 = scmp.eq.s32.totalorder %s20, 0
      %p131 = por %p129, %p130
      %s132 = ssub.s32 %s14, %s21
      %p133 = scmp.eq.s32.totalorder %s132, 0
      %s135 = sadd.s32 %s134, 1
      %s136 = scalar_select %p133, %s134, %s135
      %p139 = pneg %p133
      %p140 = scmp.eq.s32.totalorder %s14, 1
      %p141 = por %p139, %p140
      %p142 = scmp.ne.s32.totalorder %s134, %s137
      %p143 = scmp.eq.s32.totalorder %s14, 0
      %p144 = por %p142, %p143
      %p145 = scmp.ne.s32.totalorder %s134, %s137
      %p146 = scmp.eq.s32.totalorder %s19, 1
      %p147 = por %p145, %p146
      %p148 = scmp.ne.s32.totalorder %s137, %s138
      %p149 = scmp.eq.s32.totalorder %s19, 0
      %p150 = por %p148, %p149
      %p151 = scmp.ne.s32.totalorder %s137, %s138
      %p152 = scmp.eq.s32.totalorder %s20, 1
      %p153 = por %p151, %p152
      %p155 = scmp.ne.s32.totalorder %s138, %s154
      %p156 = scmp.eq.s32.totalorder %s20, 0
      %p157 = por %p155, %p156
      %p158 = scmp.le.s32.totalorder 1, %s14
      %p159 = scmp.lt.s32.totalorder %s14, 3
      %p160 = pnand %p158, %p159
      %p161 = pneg %p160
      // Predicated region
      $region9: #{tpu_custom_call.1} parent=5 // pred_check
        _
      $region10: #{tpu_custom_call.1} parent=5 // pred_check_branch
        %163 = sbr.rel (%p160) target = $region12
      $region11: #{tpu_custom_call.1} parent=5 // pred_region
        %s164 = ssub.s32 %s14, 1
        // Predicated region
        $region13: #{tpu_custom_call.1} parent=11 // pred_check
          %p165 = pneg %p61
        $region14: #{tpu_custom_call.1} parent=11 // pred_check_branch
          %167 = sbr.rel (%p165) target = $region16
        $region15: #{tpu_custom_call.1} parent=11 // pred_region
          _
        $region16: #{tpu_custom_call.1} parent=11 // pred_fallthru
          _
        // Predicated region
        $region17: #{tpu_custom_call.1} parent=11 // pred_check
          %p168 = pneg %p82
        $region18: #{tpu_custom_call.1} parent=11 // pred_check_branch
          %170 = sbr.rel (%p168) target = $region20
        $region19: #{tpu_custom_call.1} parent=11 // pred_region
          _
        $region20: #{tpu_custom_call.1} parent=11 // pred_fallthru
          _
        // Predicated region
        $region21: #{tpu_custom_call.1} parent=11 // pred_check
          %p171 = pneg %p103
        $region22: #{tpu_custom_call.1} parent=11 // pred_check_branch
          %173 = sbr.rel (%p171) target = $region24
        $region23: #{tpu_custom_call.1} parent=11 // pred_region
          _
        $region24: #{tpu_custom_call.1} parent=11 // pred_fallthru
          _
        // Predicated region
        $region25: #{tpu_custom_call.1} parent=11 // pred_check
          %p174 = pneg %p124
        $region26: #{tpu_custom_call.1} parent=11 // pred_check_branch
          %176 = sbr.rel (%p174) target = $region28
        $region27: #{tpu_custom_call.1} parent=11 // pred_region
          _
        $region28: #{tpu_custom_call.1} parent=11 // pred_fallthru
          _
      $region12: #{tpu_custom_call.1} parent=5 // pred_fallthru
        _
      %p177 = scmp.lt.s32.totalorder %s14, 2
      // Predicated region
      $region29: #{tpu_custom_call.1} parent=5 // pred_check
        %p178 = pneg %p177
      $region30: #{tpu_custom_call.1} parent=5 // pred_check_branch
        %180 = sbr.rel (%p178) target = $region32
      $region31: #{tpu_custom_call.1} parent=5 // pred_region
        // Predicated region
        $region33: #{tpu_custom_call.1} parent=31 // pred_check
          %p181 = pneg %p34
        $region34: #{tpu_custom_call.1} parent=31 // pred_check_branch
          %183 = sbr.rel (%p181) target = $region36
        $region35: #{tpu_custom_call.1} parent=31 // pred_region
          %p184 = scmp.lt.s32.totalorder %s14, 1
          %s185 = scalar_select %p184, %s14, 1
          %s186 = smul.addr %s185, 2
          %s187 = smul.addr %s186, 8
          %s188 = scalar_lea.vmem %s0, %s187
        $region36: #{tpu_custom_call.1} parent=31 // pred_fallthru
          _
      $region32: #{tpu_custom_call.1} parent=5 // pred_fallthru
        _
      %p189 = scmp.le.s32.totalorder 1, %s14
      %p190 = scmp.lt.s32.totalorder %s14, 3
      %p191 = pnand %p189, %p190
      %p192 = pneg %p191
      // Predicated region
      $region37: #{tpu_custom_call.1} parent=5 // pred_check
        _
      $region38: #{tpu_custom_call.1} parent=5 // pred_check_branch
        %194 = sbr.rel (%p191) target = $region40
      $region39: #{tpu_custom_call.1} parent=5 // pred_region
        %s195 = ssub.s32 %s14, 1
        %p196 = scmp.lt.s32.totalorder %s19, 1
        %s197 = scalar_select %p196, %s19, 1
        %s198 = smul.addr %s197, 2
        %s199 = smul.addr %s198, 8
        %s200 = scalar_lea.vmem %s0, %s199
        %p201 = pneg %p40
        %p202 = pneg %p37
        %p203 = pneg %p61
        %p204 = pneg %p58
        %p205 = pneg %p82
        %p206 = pneg %p79
        %p207 = pneg %p103
        %p208 = pneg %p100
        %p209 = pneg %p124
        %p210 = pneg %p121
        %p211 = pneg %p150
        %p212 = pneg %p147
        %s213 = sand.u32 %s137, 1
        %s214 = scalar_lea.sflag [#allocation3], %s213
        %s215 = sand.u32 %s137, 1
        %s216 = smul.addr %s215, 16
        %s217 = scalar_lea.vmem [#allocation2], %s216
        %p218 = scmp.lt.s32.totalorder %s19, 1
        %s219 = scalar_select %p218, %s19, 1
        %s220 = smul.addr %s219, 2
        %s221 = smul.addr %s220, 8
        %s222 = scalar_lea.vmem %s0, %s221
        %v224 = vld [vmem:[%s222] sm:$0xff]
        %v225 = vld [vmem:[%s222 + $0x8] sm:$0xff]
        %v226 = vpack.c.bf16 %v225, %v224
        %v227 = vld [vmem:[%s1] sm:$0xf]
        %v228 = vld [vmem:[%s1 + $0x4] sm:$0xf]
        %v229 = vld [vmem:[%s1 + $0x8] sm:$0xf]
        %v230 = vld [vmem:[%s1 + $0xc] sm:$0xf]
        %v235 = vunpack.c.l.b16 %v227
        %v236 = vunpack.c.l.b16 %v228
        %v237 = vunpack.c.l.b16 %v229
        %v238 = vunpack.c.l.b16 %v230
        %v239 = vpack.c.b16 %v236, %v235
        %v240 = vpack.c.b16 %v238, %v237
        %vm243 = vcmask 261120
        %v245 = vsel %vm243, %v226, 0
        %247 = vmatprep.subr.bf16.mxu0 0
        %248 = vmatpush1.bf16.msra.mxu0 0
        %249 = vmatprep.subr.bf16.mxu0 0
        %250 = vmatpush1.bf16.msra.mxu0 0
        %251 = vmatprep.subr.bf16.mxu0 0
        %252 = vmatpush1.bf16.msra.mxu0 0
        %253 = vmatprep.subr.bf16.mxu0 0
        %254 = vmatpush1.bf16.msra.mxu0 0
        %255 = vmatprep.subr.bf16.mxu0 0
        %256 = vmatpush1.bf16.msra.mxu0 0
        %257 = vmatprep.subr.bf16.mxu0 0
        %258 = vmatpush1.bf16.msra.mxu0 0
        %259 = vmatprep.subr.bf16.mxu0 0
        %260 = vmatpush1.bf16.msra.mxu0 %v240
        %261 = vmatprep.subr.bf16.mxu0 0
        %262 = vmatpush1.bf16.msra.mxu0 %v239
        %263 = vmatprep.subr.bf16.mxu0 0
        %264 = vmatpush2.bf16.msra.mxu0 0
        %265 = vmatprep.subr.bf16.mxu0 0
        %266 = vmatpush2.bf16.msra.mxu0 0
        %267 = vmatprep.subr.bf16.mxu0 0
        %268 = vmatpush2.bf16.msra.mxu0 0
        %269 = vmatprep.subr.bf16.mxu0 0
        %270 = vmatpush2.bf16.msra.mxu0 0
        %271 = vmatprep.subr.bf16.mxu0 0
        %272 = vmatpush2.bf16.msra.mxu0 0
        %273 = vmatprep.subr.bf16.mxu0 0
        %274 = vmatpush2.bf16.msra.mxu0 0
        %275 = vmatprep.subr.bf16.mxu0 0
        %276 = vmatpush2.bf16.msra.mxu0 0
        %277 = vmatprep.subr.bf16.mxu0 0
        %278 = vmatpush2.bf16.msra.mxu0 0
        %279 = vmatprep.mubr.bf16.mxu0 0
        %280 = vmatmul.mubr.bf16.gmra.mxu0 %v245
        %v281 = vpop.f32.mrf.mxu0
        %v282 = vadd.f32 0.0, %v281
        %v283 = vpop.f32.mrf.mxu0
        %v284 = vpop.f32.mrf.mxu0
        %v285 = vadd.f32 0.0, %v284
        %v286 = vpop.f32.mrf.mxu0
        %287 = vdwg.mxu0
        %v288 = vpack.c.bf16 %v285, %v282
        %s289 = scalar_lea.vmem %s1, 32
        %v290 = vld [vmem:[%s289] sm:$0xf]
        %v291 = vld [vmem:[%s289 + $0x4] sm:$0xf]
        %v292 = vld [vmem:[%s289 + $0x8] sm:$0xf]
        %v293 = vld [vmem:[%s289 + $0xc] sm:$0xf]
        %v298 = vunpack.c.l.b16 %v290
        %v299 = vunpack.c.l.b16 %v291
        %v300 = vunpack.c.l.b16 %v292
        %v301 = vunpack.c.l.b16 %v293
        %v302 = vpack.c.b16 %v299, %v298
        %v303 = vpack.c.b16 %v301, %v300
        %306 = vmatprep.subr.bf16.mxu0 0
        %307 = vmatpush1.bf16.msra.mxu0 0
        %308 = vmatprep.subr.bf16.mxu0 0
        %309 = vmatpush1.bf16.msra.mxu0 0
        %310 = vmatprep.subr.bf16.mxu0 0
        %311 = vmatpush1.bf16.msra.mxu0 0
        %312 = vmatprep.subr.bf16.mxu0 0
        %313 = vmatpush1.bf16.msra.mxu0 0
        %314 = vmatprep.subr.bf16.mxu0 0
        %315 = vmatpush1.bf16.msra.mxu0 0
        %316 = vmatprep.subr.bf16.mxu0 0
        %317 = vmatpush1.bf16.msra.mxu0 0
        %318 = vmatprep.subr.bf16.mxu0 0
        %319 = vmatpush1.bf16.msra.mxu0 %v303
        %320 = vmatprep.subr.bf16.mxu0 0
        %321 = vmatpush1.bf16.msra.mxu0 %v302
        %322 = vmatprep.subr.bf16.mxu0 0
        %323 = vmatpush2.bf16.msra.mxu0 0
        %324 = vmatprep.subr.bf16.mxu0 0
        %325 = vmatpush2.bf16.msra.mxu0 0
        %326 = vmatprep.subr.bf16.mxu0 0
        %327 = vmatpush2.bf16.msra.mxu0 0
        %328 = vmatprep.subr.bf16.mxu0 0
        %329 = vmatpush2.bf16.msra.mxu0 0
        %330 = vmatprep.subr.bf16.mxu0 0
        %331 = vmatpush2.bf16.msra.mxu0 0
        %332 = vmatprep.subr.bf16.mxu0 0
        %333 = vmatpush2.bf16.msra.mxu0 0
        %334 = vmatprep.subr.bf16.mxu0 0
        %335 = vmatpush2.bf16.msra.mxu0 0
        %336 = vmatprep.subr.bf16.mxu0 0
        %337 = vmatpush2.bf16.msra.mxu0 0
        %338 = vmatprep.mubr.bf16.mxu0 0
        %339 = vmatmul.mubr.bf16.gmra.mxu0 %v245
        %v340 = vpop.f32.mrf.mxu0
        %v341 = vadd.f32 0.0, %v340
        %v342 = vpop.f32.mrf.mxu0
        %v343 = vpop.f32.mrf.mxu0
        %v344 = vadd.f32 0.0, %v343
        %v345 = vpop.f32.mrf.mxu0
        %346 = vdwg.mxu0
        %v347 = vpack.c.bf16 %v344, %v341
        %s348 = scalar_lea.vmem %s1, 64
        %v349 = vld [vmem:[%s348] sm:$0xf]
        %v350 = vld [vmem:[%s348 + $0x4] sm:$0xf]
        %v351 = vld [vmem:[%s348 + $0x8] sm:$0xf]
        %v352 = vld [vmem:[%s348 + $0xc] sm:$0xf]
        %v357 = vunpack.c.l.b16 %v349
        %v358 = vunpack.c.l.b16 %v350
        %v359 = vunpack.c.l.b16 %v351
        %v360 = vunpack.c.l.b16 %v352
        %v361 = vpack.c.b16 %v358, %v357
        %v362 = vpack.c.b16 %v360, %v359
        %365 = vmatprep.subr.bf16.mxu0 0
        %366 = vmatpush1.bf16.msra.mxu0 0
        %367 = vmatprep.subr.bf16.mxu0 0
        %368 = vmatpush1.bf16.msra.mxu0 0
        %369 = vmatprep.subr.bf16.mxu0 0
        %370 = vmatpush1.bf16.msra.mxu0 0
        %371 = vmatprep.subr.bf16.mxu0 0
        %372 = vmatpush1.bf16.msra.mxu0 0
        %373 = vmatprep.subr.bf16.mxu0 0
        %374 = vmatpush1.bf16.msra.mxu0 0
        %375 = vmatprep.subr.bf16.mxu0 0
        %376 = vmatpush1.bf16.msra.mxu0 0
        %377 = vmatprep.subr.bf16.mxu0 0
        %378 = vmatpush1.bf16.msra.mxu0 %v362
        %379 = vmatprep.subr.bf16.mxu0 0
        %380 = vmatpush1.bf16.msra.mxu0 %v361
        %381 = vmatprep.subr.bf16.mxu0 0
        %382 = vmatpush2.bf16.msra.mxu0 0
        %383 = vmatprep.subr.bf16.mxu0 0
        %384 = vmatpush2.bf16.msra.mxu0 0
        %385 = vmatprep.subr.bf16.mxu0 0
        %386 = vmatpush2.bf16.msra.mxu0 0
        %387 = vmatprep.subr.bf16.mxu0 0
        %388 = vmatpush2.bf16.msra.mxu0 0
        %389 = vmatprep.subr.bf16.mxu0 0
        %390 = vmatpush2.bf16.msra.mxu0 0
        %391 = vmatprep.subr.bf16.mxu0 0
        %392 = vmatpush2.bf16.msra.mxu0 0
        %393 = vmatprep.subr.bf16.mxu0 0
        %394 = vmatpush2.bf16.msra.mxu0 0
        %395 = vmatprep.subr.bf16.mxu0 0
        %396 = vmatpush2.bf16.msra.mxu0 0
        %397 = vmatprep.mubr.bf16.mxu0 0
        %398 = vmatmul.mubr.bf16.gmra.mxu0 %v245
        %v399 = vpop.f32.mrf.mxu0
        %v400 = vadd.f32 0.0, %v399
        %v401 = vpop.f32.mrf.mxu0
        %v402 = vpop.f32.mrf.mxu0
        %v403 = vadd.f32 0.0, %v402
        %v404 = vpop.f32.mrf.mxu0
        %405 = vdwg.mxu0
        %v406 = vpack.c.bf16 %v403, %v400
        %v407 = vld [vmem:[%s4] sm:$0xf]
        %v408 = vld [vmem:[%s4 + $0x4] sm:$0xf]
        %v409 = vunpack.c.l.bf16 %v407
        %v410 = vunpack.c.l.bf16 %v408
        %v411 = vld [vmem:[%s2] sm:$0xf]
        %vm412 = vcmask 64512
        %v414 = vsel %vm412, %v288, 0
        %v417 = vsel %vm412, %v347, 0
        %419 = vmatprep.subr.bf16.mxu0 0
        %420 = vmatpush1.bf16.xpose.msra.mxu0 0
        %421 = vmatprep.subr.bf16.mxu0 0
        %422 = vmatpush1.bf16.xpose.msra.mxu0 0
        %423 = vmatprep.subr.bf16.mxu0 0
        %424 = vmatpush1.bf16.xpose.msra.mxu0 0
        %425 = vmatprep.subr.bf16.mxu0 0
        %426 = vmatpush1.bf16.xpose.msra.mxu0 0
        %427 = vmatprep.subr.bf16.mxu0 0
        %428 = vmatpush1.bf16.xpose.msra.mxu0 0
        %429 = vmatprep.subr.bf16.mxu0 0
        %430 = vmatpush1.bf16.xpose.msra.mxu0 0
        %431 = vmatprep.subr.bf16.mxu0 0
        %432 = vmatpush1.bf16.xpose.msra.mxu0 0
        %433 = vmatprep.subr.bf16.mxu0 0
        %434 = vmatpush1.bf16.xpose.msra.mxu0 %v417
        %435 = vmatprep.subr.bf16.mxu0 0
        %436 = vmatpush2.bf16.xpose.msra.mxu0 0
        %437 = vmatprep.subr.bf16.mxu0 0
        %438 = vmatpush2.bf16.xpose.msra.mxu0 0
        %439 = vmatprep.subr.bf16.mxu0 0
        %440 = vmatpush2.bf16.xpose.msra.mxu0 0
        %441 = vmatprep.subr.bf16.mxu0 0
        %442 = vmatpush2.bf16.xpose.msra.mxu0 0
        %443 = vmatprep.subr.bf16.mxu0 0
        %444 = vmatpush2.bf16.xpose.msra.mxu0 0
        %445 = vmatprep.subr.bf16.mxu0 0
        %446 = vmatpush2.bf16.xpose.msra.mxu0 0
        %447 = vmatprep.subr.bf16.mxu0 0
        %448 = vmatpush2.bf16.xpose.msra.mxu0 0
        %449 = vmatprep.subr.bf16.mxu0 0
        %450 = vmatpush2.bf16.xpose.msra.mxu0 0
        %451 = vmatprep.mubr.bf16.mxu0 0
        %452 = vmatmul.mubr.bf16.gmra.mxu0 %v414
        %v453 = vpop.f32.mrf.mxu0
        %v454 = vadd.f32 %v409, %v453
        %v455 = vpop.f32.mrf.mxu0
        %v456 = vpop.f32.mrf.mxu0
        %v457 = vadd.f32 %v410, %v456
        %v458 = vpop.f32.mrf.mxu0
        %459 = vdwg.mxu0
        %vm460 = vcmask 130048
        %v461 = vsel %vm460, %v454, -inf
        %462 = vmax.xlane.f32.xlu0 %v461
        %v463 = vpop.xlane.xlu0 %462
        %v464 = vsel %vm460, %v457, -inf
        %465 = vmax.xlane.f32.xlu0 %v464
        %v466 = vpop.xlane.xlu0 %465
        %v467 = vsub.f32 %v454, %v463
        %v468 = vsub.f32 %v457, %v466
        %v469 = vmul.f32 %v467, 1.442695
        %v470 = vpow.pop %v469
        %v471 = vmul.f32 %v468, 1.442695
        %v472 = vpow.pop %v471
        %v473 = vsel %vm460, %v470, 0.0
        %474 = vadd.xlane.f32.xlu0 %v473
        %v475 = vpop.xlane.xlu0 %474
        %v476 = vsel %vm460, %v472, 0.0
        %477 = vadd.xlane.f32.xlu0 %v476
        %v478 = vpop.xlane.xlu0 %477
        %v479 = vrcp.pop %v475
        %v480 = vrcp.pop %v478
        %v481 = vmul.f32 %v470, %v479
        %v482 = vmul.f32 %v472, %v480
        %v483 = vpack.c.bf16 %v482, %v481
        %v485 = vsel %vm460, %v483, 0
        %487 = vmatprep.subr.bf16.mxu0 0
        %488 = vmatpush1.bf16.msra.mxu0 0
        %489 = vmatprep.subr.bf16.mxu0 0
        %490 = vmatpush1.bf16.msra.mxu0 0
        %491 = vmatprep.subr.bf16.mxu0 0
        %492 = vmatpush1.bf16.msra.mxu0 0
        %493 = vmatprep.subr.bf16.mxu0 0
        %494 = vmatpush1.bf16.msra.mxu0 0
        %495 = vmatprep.subr.bf16.mxu0 0
        %496 = vmatpush1.bf16.msra.mxu0 0
        %497 = vmatprep.subr.bf16.mxu0 0
        %498 = vmatpush1.bf16.msra.mxu0 0
        %499 = vmatprep.subr.bf16.mxu0 0
        %500 = vmatpush1.bf16.msra.mxu0 0
        %501 = vmatprep.subr.bf16.mxu0 0
        %502 = vmatpush1.bf16.msra.mxu0 %v406
        %503 = vmatprep.subr.bf16.mxu0 0
        %504 = vmatpush2.bf16.msra.mxu0 0
        %505 = vmatprep.subr.bf16.mxu0 0
        %506 = vmatpush2.bf16.msra.mxu0 0
        %507 = vmatprep.subr.bf16.mxu0 0
        %508 = vmatpush2.bf16.msra.mxu0 0
        %509 = vmatprep.subr.bf16.mxu0 0
        %510 = vmatpush2.bf16.msra.mxu0 0
        %511 = vmatprep.subr.bf16.mxu0 0
        %512 = vmatpush2.bf16.msra.mxu0 0
        %513 = vmatprep.subr.bf16.mxu0 0
        %514 = vmatpush2.bf16.msra.mxu0 0
        %515 = vmatprep.subr.bf16.mxu0 0
        %516 = vmatpush2.bf16.msra.mxu0 0
        %517 = vmatprep.subr.bf16.mxu0 0
        %518 = vmatpush2.bf16.msra.mxu0 0
        %519 = vmatprep.mubr.bf16.mxu0 0
        %520 = vmatmul.mubr.bf16.gmra.mxu0 %v485
        %v521 = vpop.f32.mrf.mxu0
        %v522 = vadd.f32 0.0, %v521
        %v523 = vpop.f32.mrf.mxu0
        %v524 = vpop.f32.mrf.mxu0
        %v525 = vadd.f32 0.0, %v524
        %v526 = vpop.f32.mrf.mxu0
        %527 = vdwg.mxu0
        %v528 = vpack.c.bf16 %v525, %v522
        %s529 = scalar_lea.vmem %s1, 16
        %v530 = vld [vmem:[%s529] sm:$0xf]
        %v531 = vld [vmem:[%s529 + $0x4] sm:$0xf]
        %v532 = vld [vmem:[%s529 + $0x8] sm:$0xf]
        %v533 = vld [vmem:[%s529 + $0xc] sm:$0xf]
        %v538 = vunpack.c.l.b16 %v530
        %v539 = vunpack.c.l.b16 %v531
        %v540 = vunpack.c.l.b16 %v532
        %v541 = vunpack.c.l.b16 %v533
        %v542 = vpack.c.b16 %v539, %v538
        %v543 = vpack.c.b16 %v541, %v540
        %546 = vmatprep.subr.bf16.mxu0 0
        %547 = vmatpush1.bf16.msra.mxu0 0
        %548 = vmatprep.subr.bf16.mxu0 0
        %549 = vmatpush1.bf16.msra.mxu0 0
        %550 = vmatprep.subr.bf16.mxu0 0
        %551 = vmatpush1.bf16.msra.mxu0 0
        %552 = vmatprep.subr.bf16.mxu0 0
        %553 = vmatpush1.bf16.msra.mxu0 0
        %554 = vmatprep.subr.bf16.mxu0 0
        %555 = vmatpush1.bf16.msra.mxu0 0
        %556 = vmatprep.subr.bf16.mxu0 0
        %557 = vmatpush1.bf16.msra.mxu0 0
        %558 = vmatprep.subr.bf16.mxu0 0
        %559 = vmatpush1.bf16.msra.mxu0 %v543
        %560 = vmatprep.subr.bf16.mxu0 0
        %561 = vmatpush1.bf16.msra.mxu0 %v542
        %562 = vmatprep.subr.bf16.mxu0 0
        %563 = vmatpush2.bf16.msra.mxu0 0
        %564 = vmatprep.subr.bf16.mxu0 0
        %565 = vmatpush2.bf16.msra.mxu0 0
        %566 = vmatprep.subr.bf16.mxu0 0
        %567 = vmatpush2.bf16.msra.mxu0 0
        %568 = vmatprep.subr.bf16.mxu0 0
        %569 = vmatpush2.bf16.msra.mxu0 0
        %570 = vmatprep.subr.bf16.mxu0 0
        %571 = vmatpush2.bf16.msra.mxu0 0
        %572 = vmatprep.subr.bf16.mxu0 0
        %573 = vmatpush2.bf16.msra.mxu0 0
        %574 = vmatprep.subr.bf16.mxu0 0
        %575 = vmatpush2.bf16.msra.mxu0 0
        %576 = vmatprep.subr.bf16.mxu0 0
        %577 = vmatpush2.bf16.msra.mxu0 0
        %578 = vmatprep.mubr.bf16.mxu0 0
        %579 = vmatmul.mubr.bf16.gmra.mxu0 %v245
        %v580 = vpop.f32.mrf.mxu0
        %v581 = vadd.f32 0.0, %v580
        %v582 = vpop.f32.mrf.mxu0
        %v583 = vpop.f32.mrf.mxu0
        %v584 = vadd.f32 0.0, %v583
        %v585 = vpop.f32.mrf.mxu0
        %586 = vdwg.mxu0
        %v587 = vpack.c.bf16 %v584, %v581
        %s588 = scalar_lea.vmem %s1, 48
        %v589 = vld [vmem:[%s588] sm:$0xf]
        %v590 = vld [vmem:[%s588 + $0x4] sm:$0xf]
        %v591 = vld [vmem:[%s588 + $0x8] sm:$0xf]
        %v592 = vld [vmem:[%s588 + $0xc] sm:$0xf]
        %v597 = vunpack.c.l.b16 %v589
        %v598 = vunpack.c.l.b16 %v590
        %v599 = vunpack.c.l.b16 %v591
        %v600 = vunpack.c.l.b16 %v592
        %v601 = vpack.c.b16 %v598, %v597
        %v602 = vpack.c.b16 %v600, %v599
        %605 = vmatprep.subr.bf16.mxu0 0
        %606 = vmatpush1.bf16.msra.mxu0 0
        %607 = vmatprep.subr.bf16.mxu0 0
        %608 = vmatpush1.bf16.msra.mxu0 0
        %609 = vmatprep.subr.bf16.mxu0 0
        %610 = vmatpush1.bf16.msra.mxu0 0
        %611 = vmatprep.subr.bf16.mxu0 0
        %612 = vmatpush1.bf16.msra.mxu0 0
        %613 = vmatprep.subr.bf16.mxu0 0
        %614 = vmatpush1.bf16.msra.mxu0 0
        %615 = vmatprep.subr.bf16.mxu0 0
        %616 = vmatpush1.bf16.msra.mxu0 0
        %617 = vmatprep.subr.bf16.mxu0 0
        %618 = vmatpush1.bf16.msra.mxu0 %v602
        %619 = vmatprep.subr.bf16.mxu0 0
        %620 = vmatpush1.bf16.msra.mxu0 %v601
        %621 = vmatprep.subr.bf16.mxu0 0
        %622 = vmatpush2.bf16.msra.mxu0 0
        %623 = vmatprep.subr.bf16.mxu0 0
        %624 = vmatpush2.bf16.msra.mxu0 0
        %625 = vmatprep.subr.bf16.mxu0 0
        %626 = vmatpush2.bf16.msra.mxu0 0
        %627 = vmatprep.subr.bf16.mxu0 0
        %628 = vmatpush2.bf16.msra.mxu0 0
        %629 = vmatprep.subr.bf16.mxu0 0
        %630 = vmatpush2.bf16.msra.mxu0 0
        %631 = vmatprep.subr.bf16.mxu0 0
        %632 = vmatpush2.bf16.msra.mxu0 0
        %633 = vmatprep.subr.bf16.mxu0 0
        %634 = vmatpush2.bf16.msra.mxu0 0
        %635 = vmatprep.subr.bf16.mxu0 0
        %636 = vmatpush2.bf16.msra.mxu0 0
        %637 = vmatprep.mubr.bf16.mxu0 0
        %638 = vmatmul.mubr.bf16.gmra.mxu0 %v245
        %v639 = vpop.f32.mrf.mxu0
        %v640 = vadd.f32 0.0, %v639
        %v641 = vpop.f32.mrf.mxu0
        %v642 = vpop.f32.mrf.mxu0
        %v643 = vadd.f32 0.0, %v642
        %v644 = vpop.f32.mrf.mxu0
        %645 = vdwg.mxu0
        %v646 = vpack.c.bf16 %v643, %v640
        %s647 = scalar_lea.vmem %s1, 80
        %v648 = vld [vmem:[%s647] sm:$0xf]
        %v649 = vld [vmem:[%s647 + $0x4] sm:$0xf]
        %v650 = vld [vmem:[%s647 + $0x8] sm:$0xf]
        %v651 = vld [vmem:[%s647 + $0xc] sm:$0xf]
        %v656 = vunpack.c.l.b16 %v648
        %v657 = vunpack.c.l.b16 %v649
        %v658 = vunpack.c.l.b16 %v650
        %v659 = vunpack.c.l.b16 %v651
        %v660 = vpack.c.b16 %v657, %v656
        %v661 = vpack.c.b16 %v659, %v658
        %664 = vmatprep.subr.bf16.mxu0 0
        %665 = vmatpush1.bf16.msra.mxu0 0
        %666 = vmatprep.subr.bf16.mxu0 0
        %667 = vmatpush1.bf16.msra.mxu0 0
        %668 = vmatprep.subr.bf16.mxu0 0
        %669 = vmatpush1.bf16.msra.mxu0 0
        %670 = vmatprep.subr.bf16.mxu0 0
        %671 = vmatpush1.bf16.msra.mxu0 0
        %672 = vmatprep.subr.bf16.mxu0 0
        %673 = vmatpush1.bf16.msra.mxu0 0
        %674 = vmatprep.subr.bf16.mxu0 0
        %675 = vmatpush1.bf16.msra.mxu0 0
        %676 = vmatprep.subr.bf16.mxu0 0
        %677 = vmatpush1.bf16.msra.mxu0 %v661
        %678 = vmatprep.subr.bf16.mxu0 0
        %679 = vmatpush1.bf16.msra.mxu0 %v660
        %680 = vmatprep.subr.bf16.mxu0 0
        %681 = vmatpush2.bf16.msra.mxu0 0
        %682 = vmatprep.subr.bf16.mxu0 0
        %683 = vmatpush2.bf16.msra.mxu0 0
        %684 = vmatprep.subr.bf16.mxu0 0
        %685 = vmatpush2.bf16.msra.mxu0 0
        %686 = vmatprep.subr.bf16.mxu0 0
        %687 = vmatpush2.bf16.msra.mxu0 0
        %688 = vmatprep.subr.bf16.mxu0 0
        %689 = vmatpush2.bf16.msra.mxu0 0
        %690 = vmatprep.subr.bf16.mxu0 0
        %691 = vmatpush2.bf16.msra.mxu0 0
        %692 = vmatprep.subr.bf16.mxu0 0
        %693 = vmatpush2.bf16.msra.mxu0 0
        %694 = vmatprep.subr.bf16.mxu0 0
        %695 = vmatpush2.bf16.msra.mxu0 0
        %696 = vmatprep.mubr.bf16.mxu0 0
        %697 = vmatmul.mubr.bf16.gmra.mxu0 %v245
        %v698 = vpop.f32.mrf.mxu0
        %v699 = vadd.f32 0.0, %v698
        %v700 = vpop.f32.mrf.mxu0
        %v701 = vpop.f32.mrf.mxu0
        %v702 = vadd.f32 0.0, %v701
        %v703 = vpop.f32.mrf.mxu0
        %704 = vdwg.mxu0
        %v705 = vpack.c.bf16 %v702, %v699
        %s706 = scalar_lea.vmem %s4, 8
        %v707 = vld [vmem:[%s706] sm:$0xf]
        %v708 = vld [vmem:[%s706 + $0x4] sm:$0xf]
        %v709 = vunpack.c.l.bf16 %v707
        %v710 = vunpack.c.l.bf16 %v708
        %s711 = scalar_lea.vmem %s2, 4
        %v712 = vld [vmem:[%s711] sm:$0xf]
        %v714 = vsel %vm412, %v587, 0
        %v717 = vsel %vm412, %v646, 0
        %719 = vmatprep.subr.bf16.mxu0 0
        %720 = vmatpush1.bf16.xpose.msra.mxu0 0
        %721 = vmatprep.subr.bf16.mxu0 0
        %722 = vmatpush1.bf16.xpose.msra.mxu0 0
        %723 = vmatprep.subr.bf16.mxu0 0
        %724 = vmatpush1.bf16.xpose.msra.mxu0 0
        %725 = vmatprep.subr.bf16.mxu0 0
        %726 = vmatpush1.bf16.xpose.msra.mxu0 0
        %727 = vmatprep.subr.bf16.mxu0 0
        %728 = vmatpush1.bf16.xpose.msra.mxu0 0
        %729 = vmatprep.subr.bf16.mxu0 0
        %730 = vmatpush1.bf16.xpose.msra.mxu0 0
        %731 = vmatprep.subr.bf16.mxu0 0
        %732 = vmatpush1.bf16.xpose.msra.mxu0 0
        %733 = vmatprep.subr.bf16.mxu0 0
        %734 = vmatpush1.bf16.xpose.msra.mxu0 %v717
        %735 = vmatprep.subr.bf16.mxu0 0
        %736 = vmatpush2.bf16.xpose.msra.mxu0 0
        %737 = vmatprep.subr.bf16.mxu0 0
        %738 = vmatpush2.bf16.xpose.msra.mxu0 0
        %739 = vmatprep.subr.bf16.mxu0 0
        %740 = vmatpush2.bf16.xpose.msra.mxu0 0
        %741 = vmatprep.subr.bf16.mxu0 0
        %742 = vmatpush2.bf16.xpose.msra.mxu0 0
        %743 = vmatprep.subr.bf16.mxu0 0
        %744 = vmatpush2.bf16.xpose.msra.mxu0 0
        %745 = vmatprep.subr.bf16.mxu0 0
        %746 = vmatpush2.bf16.xpose.msra.mxu0 0
        %747 = vmatprep.subr.bf16.mxu0 0
        %748 = vmatpush2.bf16.xpose.msra.mxu0 0
        %749 = vmatprep.subr.bf16.mxu0 0
        %750 = vmatpush2.bf16.xpose.msra.mxu0 0
        %751 = vmatprep.mubr.bf16.mxu0 0
        %752 = vmatmul.mubr.bf16.gmra.mxu0 %v714
        %v753 = vpop.f32.mrf.mxu0
        %v754 = vadd.f32 %v709, %v753
        %v755 = vpop.f32.mrf.mxu0
        %v756 = vpop.f32.mrf.mxu0
        %v757 = vadd.f32 %v710, %v756
        %v758 = vpop.f32.mrf.mxu0
        %759 = vdwg.mxu0
        %v760 = vsel %vm460, %v754, -inf
        %761 = vmax.xlane.f32.xlu0 %v760
        %v762 = vpop.xlane.xlu0 %761
        %v763 = vsel %vm460, %v757, -inf
        %764 = vmax.xlane.f32.xlu0 %v763
        %v765 = vpop.xlane.xlu0 %764
        %v766 = vsub.f32 %v754, %v762
        %v767 = vsub.f32 %v757, %v765
        %v768 = vmul.f32 %v766, 1.442695
        %v769 = vpow.pop %v768
        %v770 = vmul.f32 %v767, 1.442695
        %v771 = vpow.pop %v770
        %v772 = vsel %vm460, %v769, 0.0
        %773 = vadd.xlane.f32.xlu0 %v772
        %v774 = vpop.xlane.xlu0 %773
        %v775 = vsel %vm460, %v771, 0.0
        %776 = vadd.xlane.f32.xlu0 %v775
        %v777 = vpop.xlane.xlu0 %776
        %v778 = vrcp.pop %v774
        %v779 = vrcp.pop %v777
        %v780 = vmul.f32 %v769, %v778
        %v781 = vmul.f32 %v771, %v779
        %v782 = vpack.c.bf16 %v781, %v780
        %v784 = vsel %vm460, %v782, 0
        %786 = vmatprep.subr.bf16.mxu0 0
        %787 = vmatpush1.bf16.msra.mxu0 0
        %788 = vmatprep.subr.bf16.mxu0 0
        %789 = vmatpush1.bf16.msra.mxu0 0
        %790 = vmatprep.subr.bf16.mxu0 0
        %791 = vmatpush1.bf16.msra.mxu0 0
        %792 = vmatprep.subr.bf16.mxu0 0
        %793 = vmatpush1.bf16.msra.mxu0 0
        %794 = vmatprep.subr.bf16.mxu0 0
        %795 = vmatpush1.bf16.msra.mxu0 0
        %796 = vmatprep.subr.bf16.mxu0 0
        %797 = vmatpush1.bf16.msra.mxu0 0
        %798 = vmatprep.subr.bf16.mxu0 0
        %799 = vmatpush1.bf16.msra.mxu0 0
        %800 = vmatprep.subr.bf16.mxu0 0
        %801 = vmatpush1.bf16.msra.mxu0 %v705
        %802 = vmatprep.subr.bf16.mxu0 0
        %803 = vmatpush2.bf16.msra.mxu0 0
        %804 = vmatprep.subr.bf16.mxu0 0
        %805 = vmatpush2.bf16.msra.mxu0 0
        %806 = vmatprep.subr.bf16.mxu0 0
        %807 = vmatpush2.bf16.msra.mxu0 0
        %808 = vmatprep.subr.bf16.mxu0 0
        %809 = vmatpush2.bf16.msra.mxu0 0
        %810 = vmatprep.subr.bf16.mxu0 0
        %811 = vmatpush2.bf16.msra.mxu0 0
        %812 = vmatprep.subr.bf16.mxu0 0
        %813 = vmatpush2.bf16.msra.mxu0 0
        %814 = vmatprep.subr.bf16.mxu0 0
        %815 = vmatpush2.bf16.msra.mxu0 0
        %816 = vmatprep.subr.bf16.mxu0 0
        %817 = vmatpush2.bf16.msra.mxu0 0
        %818 = vmatprep.mubr.bf16.mxu0 0
        %819 = vmatmul.mubr.bf16.gmra.mxu0 %v784
        %v820 = vpop.f32.mrf.mxu0
        %v821 = vadd.f32 0.0, %v820
        %v822 = vpop.f32.mrf.mxu0
        %v823 = vpop.f32.mrf.mxu0
        %v824 = vadd.f32 0.0, %v823
        %v825 = vpop.f32.mrf.mxu0
        %826 = vdwg.mxu0
        %v827 = vpack.c.bf16 %v824, %v821
        %v829 = vsel %vm412, %v827, 0
        %vm831 = vcmask 1043456
        %v833 = vsel %vm831, %v712, 0
        %835 = vmatprep.subr.bf16.mxu0 0
        %836 = vmatpush1.bf16.msra.mxu0 0
        %837 = vmatprep.subr.bf16.mxu0 0
        %838 = vmatpush1.bf16.msra.mxu0 0
        %839 = vmatprep.subr.bf16.mxu0 0
        %840 = vmatpush1.bf16.msra.mxu0 0
        %841 = vmatprep.subr.bf16.mxu0 0
        %842 = vmatpush1.bf16.msra.mxu0 0
        %843 = vmatprep.subr.bf16.mxu0 0
        %844 = vmatpush1.bf16.msra.mxu0 0
        %845 = vmatprep.subr.bf16.mxu0 0
        %846 = vmatpush1.bf16.msra.mxu0 0
        %847 = vmatprep.subr.bf16.mxu0 0
        %848 = vmatpush1.bf16.msra.mxu0 0
        %849 = vmatprep.subr.bf16.mxu0 0
        %850 = vmatpush1.bf16.msra.mxu0 %v833
        %851 = vmatprep.subr.bf16.mxu0 0
        %852 = vmatpush2.bf16.msra.mxu0 0
        %853 = vmatprep.subr.bf16.mxu0 0
        %854 = vmatpush2.bf16.msra.mxu0 0
        %855 = vmatprep.subr.bf16.mxu0 0
        %856 = vmatpush2.bf16.msra.mxu0 0
        %857 = vmatprep.subr.bf16.mxu0 0
        %858 = vmatpush2.bf16.msra.mxu0 0
        %859 = vmatprep.subr.bf16.mxu0 0
        %860 = vmatpush2.bf16.msra.mxu0 0
        %861 = vmatprep.subr.bf16.mxu0 0
        %862 = vmatpush2.bf16.msra.mxu0 0
        %863 = vmatprep.subr.bf16.mxu0 0
        %864 = vmatpush2.bf16.msra.mxu0 0
        %865 = vmatprep.subr.bf16.mxu0 0
        %866 = vmatpush2.bf16.msra.mxu0 0
        %867 = vmatprep.mubr.bf16.mxu0 0
        %868 = vmatmul.mubr.bf16.gmra.mxu0 %v829
        %v869 = vpop.f32.mrf.mxu0
        %v870 = vadd.f32 0.0, %v869
        %v871 = vpop.f32.mrf.mxu0
        %v872 = vpop.f32.mrf.mxu0
        %v873 = vadd.f32 0.0, %v872
        %v874 = vpop.f32.mrf.mxu0
        %875 = vdwg.mxu0
        %v877 = vsel %vm412, %v528, 0
        %v880 = vsel %vm831, %v411, 0
        %882 = vmatprep.subr.bf16.mxu0 0
        %883 = vmatpush1.bf16.msra.mxu0 0
        %884 = vmatprep.subr.bf16.mxu0 0
        %885 = vmatpush1.bf16.msra.mxu0 0
        %886 = vmatprep.subr.bf16.mxu0 0
        %887 = vmatpush1.bf16.msra.mxu0 0
        %888 = vmatprep.subr.bf16.mxu0 0
        %889 = vmatpush1.bf16.msra.mxu0 0
        %890 = vmatprep.subr.bf16.mxu0 0
        %891 = vmatpush1.bf16.msra.mxu0 0
        %892 = vmatprep.subr.bf16.mxu0 0
        %893 = vmatpush1.bf16.msra.mxu0 0
        %894 = vmatprep.subr.bf16.mxu0 0
        %895 = vmatpush1.bf16.msra.mxu0 0
        %896 = vmatprep.subr.bf16.mxu0 0
        %897 = vmatpush1.bf16.msra.mxu0 %v880
        %898 = vmatprep.subr.bf16.mxu0 0
        %899 = vmatpush2.bf16.msra.mxu0 0
        %900 = vmatprep.subr.bf16.mxu0 0
        %901 = vmatpush2.bf16.msra.mxu0 0
        %902 = vmatprep.subr.bf16.mxu0 0
        %903 = vmatpush2.bf16.msra.mxu0 0
        %904 = vmatprep.subr.bf16.mxu0 0
        %905 = vmatpush2.bf16.msra.mxu0 0
        %906 = vmatprep.subr.bf16.mxu0 0
        %907 = vmatpush2.bf16.msra.mxu0 0
        %908 = vmatprep.subr.bf16.mxu0 0
        %909 = vmatpush2.bf16.msra.mxu0 0
        %910 = vmatprep.subr.bf16.mxu0 0
        %911 = vmatpush2.bf16.msra.mxu0 0
        %912 = vmatprep.subr.bf16.mxu0 0
        %913 = vmatpush2.bf16.msra.mxu0 0
        %914 = vmatprep.mubr.bf16.mxu0 0
        %915 = vmatmul.mubr.bf16.gmra.mxu0 %v877
        %v916 = vpop.f32.mrf.mxu0
        %v917 = vadd.f32 %v870, %v916
        %v918 = vpop.f32.mrf.mxu0
        %v919 = vpop.f32.mrf.mxu0
        %v920 = vadd.f32 %v873, %v919
        %v921 = vpop.f32.mrf.mxu0
        %922 = vdwg.mxu0
        %v923 = vld [vmem:[%s3] sm:$0x1]
        %v925 = vlaneseq
        %v926 = vshrl.u32 %v925, 7
        %v927 = vsub.s32 0, %v926
        %v928 = vrot.slane %v923, %v927
        %v930 = vadd.f32 %v917, %v928
        %v931 = vadd.f32 %v920, %v928
        %932 = vst.msk [vmem:[%s217] sm:$0xff] %vm243, %v930
        %933 = vst.msk [vmem:[%s217 + $0x8] sm:$0xff] %vm243, %v931
        %s934 = sand.u32 %s137, 1
        %s935 = scalar_lea.sflag [#allocation3], %s934
        %s936 = sand.u32 %s137, 1
        %s937 = smul.addr %s936, 16
        %s938 = scalar_lea.vmem [#allocation2], %s937
        // Predicated region
        $region41: #{tpu_custom_call.1} parent=39 // pred_check
          %p939 = pneg %p147
        $region42: #{tpu_custom_call.1} parent=39 // pred_check_branch
          %941 = sbr.rel (%p939) target = $region44
        $region43: #{tpu_custom_call.1} parent=39 // pred_region
          %s943 = ssub.s32 256, 256
          %944 = vsyncadd %s935, %s943
          %s945 = smul.addr %s19, 2
          %s946 = smul.addr %s945, 128
          %s947 = scalar_lea.hbm %s5, %s946
          %s948 = sshll.u32 %s938, 4
          %s949 = int_to_ptr.vmem [resolvable:$true] %s948
          %954 = dma.vmem_to_hbm [thread:$0]  %s949, 256, %s947, %s935, 128, 128, 8
        $region44: #{tpu_custom_call.1} parent=39 // pred_fallthru
          _
      $region40: #{tpu_custom_call.1} parent=5 // pred_fallthru
        _
      %p955 = scmp.le.s32.totalorder 2, %s14
      // Predicated region
      $region45: #{tpu_custom_call.1} parent=5 // pred_check
        %p956 = pneg %p955
      $region46: #{tpu_custom_call.1} parent=5 // pred_check_branch
        %958 = sbr.rel (%p956) target = $region48
      $region47: #{tpu_custom_call.1} parent=5 // pred_region
        %s959 = ssub.s32 %s14, 2
        // Predicated region
        $region49: #{tpu_custom_call.1} parent=47 // pred_check
          %p960 = pneg %p153
        $region50: #{tpu_custom_call.1} parent=47 // pred_check_branch
          %962 = sbr.rel (%p960) target = $region52
        $region51: #{tpu_custom_call.1} parent=47 // pred_region
          %s963 = sand.u32 %s138, 1
          %s964 = scalar_lea.sflag [#allocation3], %s963
          %s965 = sand.u32 %s138, 1
          %s966 = smul.addr %s965, 16
          %s967 = scalar_lea.vmem [#allocation2], %s966
          %968 = dma.done %s964, 256
        $region52: #{tpu_custom_call.1} parent=47 // pred_fallthru
          _
      $region48: #{tpu_custom_call.1} parent=5 // pred_fallthru
        _
    $region6: #{tpu_custom_call.1} parent=1 // loop_footer
      %s18 = sadd.s32 1, %s14
    $region7: #{tpu_custom_call.1} parent=1 // loop_footer_branch
      %13 = sbr.rel target = $region3
    $region8: #{tpu_custom_call.1} parent=1 // loop_exit
      _
    %969 = vsyncpa [#allocation3], 1
    %s970 = scalar_lea.sflag [#allocation3], 1
    %971 = vsyncpa %s970, 1

</llo_original>
